<compile_context>
chip_gen: v5e
topology: v5e:2x2
jax: 0.10.0
libtpu: 0.0.40
codegen_flags: <defaults>
</compile_context>

<pallas_src>
import functools

import jax
import jax.numpy as jnp
from jax.experimental import pallas as pl
from jax.experimental.pallas import tpu as pltpu


# ---------------------------------------------------------------------------
# Tiling / VMEM helpers
# ---------------------------------------------------------------------------

_FWD_TARGET_BLOCK_BYTES = 8 * 1024 * 1024   # forward: 1 pipelined operand
_BWD_TARGET_BLOCK_BYTES = 6 * 1024 * 1024   # backward: 2 pipelined operands (in + out)
_NUM_FWD_SLICES = 2                         # v7x has 2 TensorCores; harmless on v5e/v6e


def _sublane_multiple(itemsize: int) -> int:
    # 32-bit -> 8 rows, 16-bit -> 16, 8-bit -> 32 (sublane packing).
    return max(8, 32 // max(1, itemsize))


def _round_up(v: int, m: int) -> int:
    return ((v + m - 1) // m) * m


def _choose_tile_rows(n: int, d: int, itemsize: int, target_bytes: int,
                      min_blocks: int = 1) -> int:
    """Pick the tile row count: byte budget bounded, sublane aligned, no batch padding."""
    sub = _sublane_multiple(itemsize)
    row_bytes = max(1, d * itemsize)
    budget_rows = max(sub, (target_bytes // row_bytes) // sub * sub)
    cover_rows = _round_up(max(n, 1), sub)          # rows needed to cover the batch
    tile = min(int(budget_rows), cover_rows)
    # Keep >= min_blocks grid steps when possible (megacore sharding on v7x).
    if min_blocks > 1 and cover_rows > sub:
        per_block = _round_up(pl.cdiv(cover_rows, min_blocks), sub)
        tile = min(tile, per_block)
    return max(sub, (tile // sub) * sub)


def _vmem_limit_bytes(block_bytes: int, num_buffered_operands: int) -> int:
    # Each pipelined operand is double-buffered; add slack for compiler scratch.
    needed = 2 * num_buffered_operands * block_bytes + (4 << 20)
    return int(min(48 << 20, max(16 << 20, needed)))


# ---------------------------------------------------------------------------
# Forward kernel: per-slice partial sum of (l2 - radius)^2
# ---------------------------------------------------------------------------

def _afn_fwd_kernel(x_ref, o_ref, acc_ref, *, step_size, n_total, tile_n,
                    chunks_per_slice):
    i = pl.program_id(1)

    @pl.when(i == 0)
    def _():
        acc_ref[...] = jnp.zeros_like(acc_ref)

    x = x_ref[...].astype(jnp.float32)                       # (tile_n, D)
    sq_sum = jnp.sum(x * x, axis=1, keepdims=True)           # (tile_n, 1)
    l2 = jnp.sqrt(sq_sum)
    # Literal forward semantics (detach is enforced by the custom_vjp).
    radius = jax.lax.stop_gradient(l2) + jnp.float32(step_size)
    diff = l2 - radius
    sq_diff = diff * diff                                    # (tile_n, 1)

    # Mask rows beyond the true batch (ragged last block / clamped duplicate block).
    # NB: keep the select (not a 0/1 multiply) -- out-of-bounds rows may hold garbage.
    blk = pl.program_id(0) * chunks_per_slice + i
    row = blk * tile_n + jax.lax.broadcasted_iota(jnp.int32, (tile_n, 1), 0)
    sq_diff = jnp.where(row < n_total, sq_diff, 0.0)

    acc_ref[...] += jnp.sum(sq_diff, axis=0, keepdims=True)  # (1, 1) partial sum

    @pl.when(i == pl.num_programs(1) - 1)
    def _():
        o_ref[...] = jnp.broadcast_to(acc_ref[...], o_ref.shape)


def _afn_forward(x, step_size, *, target_block_bytes=_FWD_TARGET_BLOCK_BYTES,
                 num_slices=_NUM_FWD_SLICES):
    assert x.ndim == 2, "expected features of shape (N, D)"
    n, d = x.shape
    itemsize = jnp.dtype(x.dtype).itemsize
    tile_n = _choose_tile_rows(n, d, itemsize, target_block_bytes)
    nblocks = pl.cdiv(n, tile_n)
    num_slices = int(max(1, min(num_slices, nblocks)))
    cpc = pl.cdiv(nblocks, num_slices)                       # chunks per parallel slice
    block_bytes = tile_n * d * itemsize

    kernel = functools.partial(
        _afn_fwd_kernel, step_size=float(step_size), n_total=n, tile_n=tile_n,
        chunks_per_slice=cpc)

    # Duplicate iterations (num_slices * cpc > nblocks) clamp to the last block; the
    # kernel's row mask zeroes their contribution.
    def x_index_map(c, i):
        return (jnp.minimum(c * cpc + i, nblocks - 1), 0)

    partials = pl.pallas_call(
        kernel,
        # (num_slices, 8, 128) keeps the output tile lane/sublane aligned; only
        # [:, 0, 0] is consumed. ~4 KiB of writeback -- negligible.
        out_shape=jax.ShapeDtypeStruct((num_slices, 8, 128), jnp.float32),
        grid_spec=pltpu.PrefetchScalarGridSpec(
            num_scalar_prefetch=0,
            grid=(num_slices, cpc),
            in_specs=[pl.BlockSpec((tile_n, d), x_index_map)],
            out_specs=pl.BlockSpec((1, 8, 128), lambda c, i: (c, 0, 0)),
            scratch_shapes=[pltpu.VMEM((1, 1), jnp.float32)],
        ),
        compiler_params=pltpu.CompilerParams(
            dimension_semantics=("parallel", "arbitrary"),
            vmem_limit_bytes=_vmem_limit_bytes(block_bytes, num_buffered_operands=1)),
        cost_estimate=pl.CostEstimate(
            flops=2 * n * d,
            transcendentals=n,
            bytes_accessed=n * d * itemsize + num_slices * 8 * 128 * 4),
    )(x)
    return jnp.sum(partials[:, 0, 0]) * jnp.float32(1.0 / n)


# ---------------------------------------------------------------------------
# Backward kernel (fused: re-reads x once, writes grad once)
# ---------------------------------------------------------------------------

def _afn_bwd_kernel(g_ref, x_ref, o_ref, *, step_size, n_total):
    x = x_ref[...].astype(jnp.float32)                   # (tile_n, D)
    sq_sum = jnp.sum(x * x, axis=1, keepdims=True)       # (tile_n, 1)
    # rsqrt on the EUP, guarded select -> 0 subgradient for all-zero rows.
    inv_l2 = jnp.where(sq_sum > 0.0, jax.lax.rsqrt(sq_sum), 0.0)
    # dL/dl2_i = (2/N)*(l2 - radius) = -(2/N)*step ;  dl2_i/dx_ij = x_ij / l2_i
    coeff = g_ref[0] * jnp.float32(-2.0 * step_size / n_total)
    o_ref[...] = ((coeff * inv_l2) * x).astype(o_ref.dtype)


def _afn_backward(x, g, step_size, *, target_block_bytes=_BWD_TARGET_BLOCK_BYTES):
    n, d = x.shape
    itemsize = jnp.dtype(x.dtype).itemsize
    # min_blocks=2 so the "parallel" axis can shard across both TCs on v7x.
    tile_n = _choose_tile_rows(n, d, itemsize, target_block_bytes, min_blocks=2)
    nblocks = pl.cdiv(n, tile_n)
    block_bytes = tile_n * d * itemsize
    g_arr = jnp.asarray(g, jnp.float32).reshape((1,))

    kernel = functools.partial(
        _afn_bwd_kernel, step_size=float(step_size), n_total=n)

    return pl.pallas_call(
        kernel,
        out_shape=jax.ShapeDtypeStruct((n, d), x.dtype),
        grid_spec=pltpu.PrefetchScalarGridSpec(
            num_scalar_prefetch=0,
            grid=(nblocks,),
            in_specs=[pl.BlockSpec(memory_space=pltpu.MemorySpace.SMEM),
                      pl.BlockSpec((tile_n, d), lambda i: (i, 0))],
            out_specs=pl.BlockSpec((tile_n, d), lambda i: (i, 0)),
        ),
        compiler_params=pltpu.CompilerParams(
            dimension_semantics=("parallel",),
            # Input AND output are each double-buffered -> 4x block bytes + slack.
            vmem_limit_bytes=_vmem_limit_bytes(block_bytes, num_buffered_operands=2)),
        cost_estimate=pl.CostEstimate(
            flops=4 * n * d,
            transcendentals=n,
            bytes_accessed=2 * n * d * itemsize),
    )(g_arr, x)


# ---------------------------------------------------------------------------
# Public API with custom_vjp (detach semantics live here, not in the kernel)
# ---------------------------------------------------------------------------

@functools.partial(jax.custom_vjp, nondiff_argnums=(1,))
def _afn_vjp(x, step_size):
    return _afn_forward(x, step_size)


def _afn_vjp_fwd(x, step_size):
    # TODO(synk): could additionally stash per-row l2 as a residual to skip the
    # sum(x*x) recompute in the backward; it is DMA-bound so the win is marginal.
    return _afn_forward(x, step_size), x


def _afn_vjp_bwd(step_size, x, g):
    return (_afn_backward(x, g, step_size),)


_afn_vjp.defvjp(_afn_vjp_fwd, _afn_vjp_bwd)


def adaptive_feature_norm(x, step_size: float = 1.0):
    """Pallas TPU implementation of AdaptiveFeatureNorm.forward for 2-D x (N, D)."""
    return _afn_vjp(x, float(step_size))


def adaptive_feature_norm_ref(x, step_size: float = 1.0):
    """Pure-JAX reference (mirrors the PyTorch module)."""
    x = x.astype(jnp.float32)
    l2 = jnp.linalg.norm(x, ord=2, axis=1)
    radius = jax.lax.stop_gradient(l2) + step_size
    return jnp.mean((l2 - radius) ** 2)


# ---------------------------------------------------------------------------
# Self-test
# ---------------------------------------------------------------------------

if __name__ == "__main__":
    key = jax.random.PRNGKey(0)
    step_size = 1.0

    # Small shape; N not a multiple of 8 to exercise the ragged-block masking.
    n, d = 10, 32
    x = jax.random.normal(key, (n, d), dtype=jnp.float32)

    loss = adaptive_feature_norm(x, step_size)
    loss = jax.block_until_ready(loss)
    ref_loss = adaptive_feature_norm_ref(x, step_size)
    assert jnp.allclose(loss, ref_loss, rtol=1e-5, atol=1e-5), (loss, ref_loss)
    # Forward value is always ~step_size**2 (radius is detached norm + step).
    assert jnp.allclose(loss, step_size ** 2, rtol=1e-5, atol=1e-5), loss

    # Gradient through the custom_vjp (fused backward Pallas kernel) vs reference.
    # Backward runs with >= 2 grid blocks (ragged last block exercised too).
    g_kernel = jax.grad(lambda xx: adaptive_feature_norm(xx, step_size))(x)
    g_kernel = jax.block_until_ready(g_kernel)
    g_ref = jax.grad(lambda xx: adaptive_feature_norm_ref(xx, step_size))(x)
    assert jnp.allclose(g_kernel, g_ref, rtol=1e-4, atol=1e-6), (g_kernel, g_ref)

    # Multi-tile + megacore-split forward path: tiny block budget -> grid (2, 2)
    # with a clamped duplicate block and a ragged last block, all masked in-kernel.
    n2, d2 = 20, 32
    x2 = jax.random.normal(jax.random.PRNGKey(1), (n2, d2), dtype=jnp.float32)
    loss2 = jax.block_until_ready(
        _afn_forward(x2, step_size, target_block_bytes=8 * d2 * 4))
    ref2 = adaptive_feature_norm_ref(x2, step_size)
    assert jnp.allclose(loss2, ref2, rtol=1e-5, atol=1e-5), (loss2, ref2)

    # Multi-block backward with a tiny block budget as well.
    g3 = jax.block_until_ready(
        _afn_backward(x2, jnp.float32(1.0), step_size, target_block_bytes=8 * d2 * 4))
    g3_ref = jax.grad(lambda xx: adaptive_feature_norm_ref(xx, step_size))(x2)
    assert jnp.allclose(g3, g3_ref, rtol=1e-4, atol=1e-6), (g3, g3_ref)

    print("KERNEL_OK")
</pallas_src>

<mosaic_0001>
module attributes {stable_mosaic.version = 11 : i64} {
  func.func @_afn_fwd_kernel(%arg0: i32, %arg1: i32, %arg2: memref<16x32xf32, #tpu.memory_space<vmem>>, %arg3: memref<1x8x128xf32, #tpu.memory_space<vmem>>, %arg4: memref<1x1xf32, #tpu.memory_space<vmem>>) attributes {dimension_semantics = [#tpu.dimension_semantics<parallel>, #tpu.dimension_semantics<arbitrary>], iteration_bounds = array<i64: 1, 1>, scalar_prefetch = 0 : i64, scratch_operands = 1 : i64, tpu.core_type = #tpu.core_type<tc>, window_params = [{transform_indices = @transform_0, window_bounds = array<i64: 16, 32>}, {transform_indices = @transform_1, window_bounds = array<i64: 1, 8, 128>}]} {
    %c0_i32 = arith.constant 0 : i32
    %0 = arith.cmpi eq, %arg1, %c0_i32 : i32
    %1 = arith.extui %0 : i1 to i32
    %c0_i32_0 = arith.constant 0 : i32
    %2 = arith.cmpi ne, %1, %c0_i32_0 : i32
    scf.if %2 {
      %cst_11 = arith.constant 0.000000e+00 : f32
      %30 = vector.broadcast %cst_11 : f32 to vector<1x1xf32>
      %c0_12 = arith.constant 0 : index
      %c0_13 = arith.constant 0 : index
      %31 = vector.load %arg4[%c0_12, %c0_13] : memref<1x1xf32, #tpu.memory_space<vmem>>, vector<1x1xf32>
      tpu.vector_store %arg4[%c0_12, %c0_13], %30 {strides = array<i32>} : memref<1x1xf32, #tpu.memory_space<vmem>>, vector<1x1xf32>,
    } else {
    }
    %c0 = arith.constant 0 : index
    %c0_1 = arith.constant 0 : index
    %3 = vector.load %arg2[%c0, %c0_1] : memref<16x32xf32, #tpu.memory_space<vmem>>, vector<16x32xf32>
    %4 = arith.mulf %3, %3 : vector<16x32xf32>
    %cst = arith.constant dense<0.000000e+00> : vector<16xf32>
    %5 = vector.multi_reduction <add>, %4, %cst [1] : vector<16x32xf32> to vector<16xf32>
    %6 = vector.shape_cast %5 : vector<16xf32> to vector<16x1xf32>
    %7 = math.sqrt %6 : vector<16x1xf32>
    %cst_2 = arith.constant 1.000000e+00 : f32
    %8 = vector.broadcast %cst_2 : f32 to vector<16x1xf32>
    %9 = arith.addf %7, %8 : vector<16x1xf32>
    %10 = arith.subf %7, %9 : vector<16x1xf32>
    %11 = arith.mulf %10, %10 : vector<16x1xf32>
    %c1_i32 = arith.constant 1 : i32
    %12 = arith.muli %arg0, %c1_i32 : i32
    %13 = arith.addi %12, %arg1 : i32
    %c16_i32 = arith.constant 16 : i32
    %14 = arith.muli %13, %c16_i32 : i32
    %15 = tpu.iota {dimensions = array<i32: 0>} : vector<16x1xi32>
    %16 = vector.broadcast %14 : i32 to vector<16x1xi32>
    %17 = arith.addi %16, %15 : vector<16x1xi32>
    %c10_i32 = arith.constant 10 : i32
    %18 = vector.broadcast %c10_i32 : i32 to vector<16x1xi32>
    %19 = arith.cmpi slt, %17, %18 : vector<16x1xi32>
    %cst_3 = arith.constant 0.000000e+00 : f32
    %20 = vector.broadcast %cst_3 : f32 to vector<16x1xf32>
    %21 = arith.select %19, %11, %20 : vector<16x1xi1>, vector<16x1xf32>
    %c0_4 = arith.constant 0 : index
    %c0_5 = arith.constant 0 : index
    %22 = vector.load %arg4[%c0_4, %c0_5] : memref<1x1xf32, #tpu.memory_space<vmem>>, vector<1x1xf32>
    %cst_6 = arith.constant dense<0.000000e+00> : vector<1xf32>
    %23 = vector.multi_reduction <add>, %21, %cst_6 [0] : vector<16x1xf32> to vector<1xf32>
    %24 = vector.shape_cast %23 : vector<1xf32> to vector<1x1xf32>
    %25 = arith.addf %22, %24 : vector<1x1xf32>
    %c0_7 = arith.constant 0 : index
    %c0_8 = arith.constant 0 : index
    %26 = vector.load %arg4[%c0_7, %c0_8] : memref<1x1xf32, #tpu.memory_space<vmem>>, vector<1x1xf32>
    tpu.vector_store %arg4[%c0_7, %c0_8], %25 {strides = array<i32>} : memref<1x1xf32, #tpu.memory_space<vmem>>, vector<1x1xf32>,
    %c0_i32_9 = arith.constant 0 : i32
    %27 = arith.cmpi eq, %arg1, %c0_i32_9 : i32
    %28 = arith.extui %27 : i1 to i32
    %c0_i32_10 = arith.constant 0 : i32
    %29 = arith.cmpi ne, %28, %c0_i32_10 : i32
    scf.if %29 {
      %c0_11 = arith.constant 0 : index
      %c0_12 = arith.constant 0 : index
      %30 = vector.load %arg4[%c0_11, %c0_12] : memref<1x1xf32, #tpu.memory_space<vmem>>, vector<1x1xf32>
      %31 = vector.shape_cast %30 : vector<1x1xf32> to vector<1x1x1xf32>
      %32 = vector.broadcast %31 : vector<1x1x1xf32> to vector<1x8x128xf32>
      %c0_13 = arith.constant 0 : index
      %c0_14 = arith.constant 0 : index
      %c0_15 = arith.constant 0 : index
      %33 = vector.load %arg3[%c0_13, %c0_14, %c0_15] : memref<1x8x128xf32, #tpu.memory_space<vmem>>, vector<1x8x128xf32>
      tpu.vector_store %arg3[%c0_13, %c0_14, %c0_15], %32 {strides = array<i32>} : memref<1x8x128xf32, #tpu.memory_space<vmem>>, vector<1x8x128xf32>,
    } else {
    }
    return
  }
  func.func @transform_0(%arg0: i32, %arg1: i32) -> (i32, i32) {
    %c1_i32 = arith.constant 1 : i32
    %0 = arith.muli %arg0, %c1_i32 : i32
    %1 = arith.addi %0, %arg1 : i32
    %c0_i32 = arith.constant 0 : i32
    %2 = arith.minsi %1, %c0_i32 : i32
    %c0_i32_0 = arith.constant 0 : i32
    %c0_i32_1 = arith.constant 0 : i32
    return %2, %c0_i32_0 : i32, i32
  }
  func.func @transform_1(%arg0: i32, %arg1: i32) -> (i32, i32, i32) {
    %c0_i32 = arith.constant 0 : i32
    %c0_i32_0 = arith.constant 0 : i32
    %c0_i32_1 = arith.constant 0 : i32
    return %arg0, %c0_i32, %c0_i32_0 : i32, i32, i32
  }
}

</mosaic_0001>

<llo_original>
// kernel: tpu_custom_call.1
$region0: #{tpu_custom_call.1}
  #allocation0 [shape = 'u32[]', space=smem, size = 0x4, offset = 0x4, fixed_abs, tag = 'smem constant byte address 0x4 - core index']
  #allocation1 [shape = 'u32[72,128]{1,0:T(1,128)}', space=vmem, size = 0x9000, scoped, tag = 'internal scratch']
  #allocation2 [shape = 'f32[1,1]{1,0:T(1,128)}', space=vmem, size = 0x200, scoped, tag = 'scratch operand']
  %s0 = inlined_call_operand.hbm [shape: f32[10,32], index: 0, kind: input, shape index: {}]
  %s1 = inlined_call_operand.hbm [shape: f32[1,8,128], index: 1, kind: output, shape index: {}]
  %s2 = sld [smem:[#allocation0]]
  $region26: #{tpu_custom_call.1} parent=0
    _
  %s4 = ssub.s32 1, %s2
  %s5 = scalar_select 0, %s4, %s2
  $region1: #{tpu_custom_call.1} parent=0
    #allocation3 [shape = 'u8[8192]{0}', space=vmem, size = 0x2000, scoped, tag = 'input window, operand 0, single buffered']
    #allocation4 [shape = 's32[1]{0}', space=sflag, size = 0x4, scoped, tag = 'scoped memory for tpu_custom_call.1']
    #allocation5 [shape = 's32[1]{0}', space=sflag, size = 0x4, scoped, tag = 'scoped memory for tpu_custom_call.1']
    #allocation6 [shape = 'u8[4096]{0}', space=vmem, size = 0x1000, scoped, tag = 'output window, operand 0, single buffered']
    %6 = vsyncpa [#allocation4], 0
    %7 = vsyncpa [#allocation5], 0
    // Predicated region
    $region2: #{tpu_custom_call.1} parent=1 // pred_check
      _
    $region3: #{tpu_custom_call.1} parent=1 // pred_check_branch
      %9 = sbr.rel (0) target = $region5
    $region4: #{tpu_custom_call.1} parent=1 // pred_region
      %s10 = sadd.s32 0, 0
      %p11 = scmp.lt.s32.totalorder %s10, 0
      %s12 = scalar_select %p11, %s10, 0
      %s13 = smul.u32 2, %s12
      %15 = vsyncadd [#allocation4], 0
      %s16 = smul.addr %s13, 8
      %s17 = scalar_lea.hbm %s0, %s16
      %s18 = sshll.u32 %s17, 4
      %s19 = int_to_ptr.hbm [resolvable:$true] %s18
      %s20 = sshll.u32 [#allocation3], 4
      %s21 = int_to_ptr.vmem [resolvable:$true] %s20
      %26 = dma.hbm_to_vmem [thread:$0]  %s19, 256, %s21, [#allocation4], 128, 128, 8
    $region5: #{tpu_custom_call.1} parent=1 // pred_fallthru
      _
    // Predicated region
    $region6: #{tpu_custom_call.1} parent=1 // pred_check
      _
    $region7: #{tpu_custom_call.1} parent=1 // pred_check_branch
      %28 = sbr.rel (0) target = $region9
    $region8: #{tpu_custom_call.1} parent=1 // pred_region
      %30 = dma.done [#allocation4], 256
    $region9: #{tpu_custom_call.1} parent=1 // pred_fallthru
      _
    %s31 = sadd.s32 0, 0
    %p32 = scmp.lt.s32.totalorder %s31, 0
    %s33 = scalar_select %p32, %s31, 0
    %s34 = smul.u32 2, %s33
    %p35 = scmp.eq.s32.totalorder 0, 0
    // Predicated region
    $region10: #{tpu_custom_call.1} parent=1 // pred_check
      %p36 = pneg %p35
    $region11: #{tpu_custom_call.1} parent=1 // pred_check_branch
      %38 = sbr.rel (%p36) target = $region13
    $region12: #{tpu_custom_call.1} parent=1 // pred_region
      %vm39 = vcmask 0
      %40 = vst.msk [vmem:[#allocation2] sm:$0x1] %vm39, 0.0
    $region13: #{tpu_custom_call.1} parent=1 // pred_fallthru
      _
    %v41 = vld [vmem:[#allocation3] sm:$0xff]
    %v42 = vld [vmem:[#allocation3 + $0x8] sm:$0xff]
    %v43 = vmul.f32 %v41, %v41
    %v44 = vmul.f32 %v42, %v42
    %vm45 = vcmask 261120
    %v46 = vsel %vm45, %v43, 0.0
    %47 = vadd.xlane.f32.xlu0 %v46
    %v48 = vpop.xlane.xlu0 %47
    %v49 = vsel %vm45, %v44, 0.0
    %50 = vadd.xlane.f32.xlu0 %v49
    %v51 = vpop.xlane.xlu0 %50
    %v52 = vrsqrt.pop %v48
    %v53 = vmul.f32 %v52, %v48
    %v54 = vmul.f32 %v53, %v52
    %v55 = vmul.f32 0.5, %v54
    %v56 = vsub.f32 1.5, %v55
    %v57 = vmul.f32 %v52, %v56
    %v58 = vmul.f32 %v48, %v57
    %vm59 = vcmp.eq.f32.partialorder %v48, inf
    %v60 = vsel %vm59, %v48, %v58
    %vm61 = vcmp.eq.f32.partialorder %v48, 0.0
    %v62 = vand.u32 %v48, 2147483648
    %v63 = vsel %vm61, %v62, %v60
    %v64 = vrsqrt.pop %v51
    %v65 = vmul.f32 %v64, %v51
    %v66 = vmul.f32 %v65, %v64
    %v67 = vmul.f32 0.5, %v66
    %v68 = vsub.f32 1.5, %v67
    %v69 = vmul.f32 %v64, %v68
    %v70 = vmul.f32 %v51, %v69
    %vm71 = vcmp.eq.f32.partialorder %v51, inf
    %v72 = vsel %vm71, %v51, %v70
    %vm73 = vcmp.eq.f32.partialorder %v51, 0.0
    %v74 = vand.u32 %v51, 2147483648
    %v75 = vsel %vm73, %v74, %v72
    %v76 = vadd.f32 %v63, 1.0
    %v77 = vadd.f32 %v75, 1.0
    %v78 = vsub.f32 %v63, %v76
    %v79 = vsub.f32 %v75, %v77
    %v80 = vmul.f32 %v78, %v78
    %v81 = vmul.f32 %v79, %v79
    %s82 = sadd.s32 0, 0
    %s83 = smul.u32 %s82, 16
    %v84 = vlaneseq
    %v85 = vshrl.u32 %v84, 7
    %v86 = vadd.s32 %v85, 8
    %v87 = vstv %s83
    %v88 = vadd.s32 %v87, %v85
    %v89 = vadd.s32 %v87, %v86
    %vm90 = vcmp.lt.s32.totalorder %v88, 10
    %vm91 = vcmp.lt.s32.totalorder %v89, 10
    %v92 = vsel %vm90, %v80, 0.0
    %v93 = vsel %vm91, %v81, 0.0
    %v94 = vld [vmem:[#allocation2] sm:$0x1]
    %v95 = vadd.f32 %v92, %v93
    %v96 = vrot.slane %v95, 4
    %v97 = vadd.f32 %v95, %v96
    %v98 = vrot.slane %v97, 2
    %v99 = vadd.f32 %v97, %v98
    %v100 = vrot.slane %v99, 1
    %v101 = vadd.f32 %v99, %v100
    %v102 = vadd.f32 %v94, %v101
    %vm103 = vcmask 0
    %104 = vst.msk [vmem:[#allocation2] sm:$0x1] %vm103, %v102
    // Predicated region
    $region14: #{tpu_custom_call.1} parent=1 // pred_check
      %p105 = pneg %p35
    $region15: #{tpu_custom_call.1} parent=1 // pred_check_branch
      %107 = sbr.rel (%p105) target = $region17
    $region16: #{tpu_custom_call.1} parent=1 // pred_region
      %v108 = vld [vmem:[#allocation2] sm:$0x1]
      %v110 = vperm.slane %v108, 0
      %111 = vset.pattern.permute.xlu0 0
      %112 = vperm.xlu0 %111, %v110
      %v113 = vpop.permute.xlu0 %112
      %115 = vst [vmem:[#allocation6] sm:$0xff] %v113
    $region17: #{tpu_custom_call.1} parent=1 // pred_fallthru
      _
    // Predicated region
    $region18: #{tpu_custom_call.1} parent=1 // pred_check
      _
    $region19: #{tpu_custom_call.1} parent=1 // pred_check_branch
      %117 = sbr.rel (0) target = $region21
    $region20: #{tpu_custom_call.1} parent=1 // pred_region
      %119 = vsyncadd [#allocation5], 0
      %s121 = sshll.u32 [#allocation6], 4
      %s122 = int_to_ptr.vmem [resolvable:$true] %s121
      %s123 = sshll.u32 %s1, 4
      %s124 = int_to_ptr.hbm [resolvable:$true] %s123
      %126 = dma.vmem_to_hbm [thread:$0]  %s122, 128, %s124, [#allocation5]
    $region21: #{tpu_custom_call.1} parent=1 // pred_fallthru
      _
    // Predicated region
    $region22: #{tpu_custom_call.1} parent=1 // pred_check
      _
    $region23: #{tpu_custom_call.1} parent=1 // pred_check_branch
      %128 = sbr.rel (0) target = $region25
    $region24: #{tpu_custom_call.1} parent=1 // pred_region
      %130 = dma.done [#allocation5], 128
    $region25: #{tpu_custom_call.1} parent=1 // pred_fallthru
      _
    %131 = vsyncpa [#allocation4], 1
    %132 = vsyncpa [#allocation5], 1

</llo_original>
